<compile_context>
chip_gen: v7x
topology: tpu7x:2x2x1
jax: 0.10.0
libtpu: 0.0.40
codegen_flags: <defaults>
</compile_context>

<pallas_src>
import jax
import jax.numpy as jnp
from jax.experimental import pallas as pl
from jax.experimental.pallas import tpu as pltpu


def _classifier_kernel(w_ref, x_ref, o_ref):
    # MXU matmul with f32 accumulate, tanh on the EUP, full-width lane store.
    acc = jnp.dot(w_ref[...], x_ref[...], preferred_element_type=jnp.float32)
    o_ref[...] = jnp.tanh(acc).astype(o_ref.dtype)


def classifier_forward(x, w, *, tile_n=1024):
    """Forward pass of the (post-module-replacement) Classifier.

    x: (N, D_in) f32  (batch-major, as the PyTorch module sees it)
    w: (D_out, D_in) f32  (PyTorch Linear weight layout)
    returns: (N, D_out) f32 == tanh(x @ w.T)
    """
    N, D_in = x.shape
    D_out = w.shape[0]

    # Lane tile: multiple of 128 when tiling; full (padded) extent otherwise.
    if N > tile_n:
        n_pad = pl.cdiv(N, tile_n) * tile_n        # tile_n is a multiple of 128
    else:
        n_pad = pl.cdiv(N, 128) * 128              # tiny batch: one lane-aligned block
        tile_n = n_pad
    grid = (n_pad // tile_n,)

    # Feature-major, zero-padded input: (D_in, n_pad).  Padding columns only
    # produce tanh(0)=0 in padded output lanes, which are sliced away below.
    x_t = jnp.zeros((D_in, n_pad), x.dtype).at[:, :N].set(x.T)

    cost = pl.CostEstimate(
        flops=2 * N * D_in * D_out,
        transcendentals=N * D_out,
        bytes_accessed=(N * D_in + N * D_out + D_in * D_out) * x.dtype.itemsize,
    )

    out_t = pl.pallas_call(
        _classifier_kernel,
        out_shape=jax.ShapeDtypeStruct((D_out, n_pad), x.dtype),
        grid=grid,
        in_specs=[
            # Weight stays resident across all batch tiles.
            pl.BlockSpec((D_out, D_in), lambda i: (0, 0)),
            # Batch tiles stream through VMEM (auto double-buffered).
            pl.BlockSpec((D_in, tile_n), lambda i: (0, i)),
        ],
        out_specs=pl.BlockSpec((D_out, tile_n), lambda i: (0, i)),
        compiler_params=pltpu.CompilerParams(
            dimension_semantics=("parallel",),
        ),
        cost_estimate=cost,
    )(w, x_t)

    # Back to the module's (N, D_out) layout, dropping batch padding.
    return out_t[:, :N].T


if __name__ == "__main__":
    dims = [64, 8]          # matches the module's default
    batch = 8               # small test shape

    key = jax.random.PRNGKey(0)
    kx, kw, kx2 = jax.random.split(key, 3)

    # PyTorch stores the Linear weight as (out_features, in_features)=(8, 64);
    # emulate the kaiming-uniform-ish init range deterministically.
    bound = 1.0 / jnp.sqrt(jnp.float32(dims[0]))
    w_pt = jax.random.uniform(kw, (dims[1], dims[0]), jnp.float32,
                              minval=-bound, maxval=bound)

    # --- test 1: tiny batch (single full-extent block path) ---
    x = jax.random.normal(kx, (batch, dims[0]), jnp.float32)       # (8, 64)
    y = jax.block_until_ready(classifier_forward(x, w_pt))
    y_ref = jnp.tanh(x @ w_pt.T)
    assert y.shape == (batch, dims[1])
    assert jnp.allclose(y, y_ref, atol=1e-5, rtol=1e-5)

    # --- test 2: batch that is not a tile multiple (multi-step grid + pad) ---
    batch2 = 200
    x2 = jax.random.normal(kx2, (batch2, dims[0]), jnp.float32)    # (200, 64)
    y2 = jax.block_until_ready(classifier_forward(x2, w_pt, tile_n=128))
    y2_ref = jnp.tanh(x2 @ w_pt.T)
    assert y2.shape == (batch2, dims[1])
    assert jnp.allclose(y2, y2_ref, atol=1e-5, rtol=1e-5)

    print("KERNEL_OK")
</pallas_src>

<mosaic_0001>
module attributes {stable_mosaic.version = 11 : i64} {
  func.func @_classifier_kernel(%arg0: i32, %arg1: memref<8x64xf32, #tpu.memory_space<vmem>>, %arg2: memref<64x128xf32, #tpu.memory_space<vmem>>, %arg3: memref<8x128xf32, #tpu.memory_space<vmem>>) attributes {dimension_semantics = [#tpu.dimension_semantics<parallel>], iteration_bounds = array<i64: 1>, scalar_prefetch = 0 : i64, scratch_operands = 0 : i64, tpu.core_type = #tpu.core_type<tc>, window_params = [{pipeline_mode = #tpu.pipeline_mode<synchronous>, transform_indices = @transform_0, window_bounds = array<i64: 8, 64>}, {transform_indices = @transform_1, window_bounds = array<i64: 64, 128>}, {transform_indices = @transform_2, window_bounds = array<i64: 8, 128>}]} {
    %c0 = arith.constant 0 : index
    %c0_0 = arith.constant 0 : index
    %0 = vector.load %arg1[%c0, %c0_0] : memref<8x64xf32, #tpu.memory_space<vmem>>, vector<8x64xf32>
    %c0_1 = arith.constant 0 : index
    %c0_2 = arith.constant 0 : index
    %1 = vector.load %arg2[%c0_1, %c0_2] : memref<64x128xf32, #tpu.memory_space<vmem>>, vector<64x128xf32>
    %cst = arith.constant dense<0.000000e+00> : vector<8x128xf32>
    %2 = tpu.matmul %0, %1, %cst {dimension_numbers = #tpu.dot_dimension_numbers<[1], [0], [0], [1], [0, 0, 1, 1], [], []>} : vector<8x64xf32>, vector<64x128xf32>, vector<8x128xf32> -> vector<8x128xf32>
    %3 = math.tanh %2 : vector<8x128xf32>
    %c0_3 = arith.constant 0 : index
    %c0_4 = arith.constant 0 : index
    %4 = vector.load %arg3[%c0_3, %c0_4] : memref<8x128xf32, #tpu.memory_space<vmem>>, vector<8x128xf32>
    tpu.vector_store %arg3[%c0_3, %c0_4], %3 {strides = array<i32>} : memref<8x128xf32, #tpu.memory_space<vmem>>, vector<8x128xf32>,
    return
  }
  func.func @transform_0(%arg0: i32) -> (i32, i32) {
    %c0_i32 = arith.constant 0 : i32
    %c0_i32_0 = arith.constant 0 : i32
    %c0_i32_1 = arith.constant 0 : i32
    return %c0_i32, %c0_i32_0 : i32, i32
  }
  func.func @transform_1(%arg0: i32) -> (i32, i32) {
    %c0_i32 = arith.constant 0 : i32
    %c0_i32_0 = arith.constant 0 : i32
    return %c0_i32, %arg0 : i32, i32
  }
  func.func @transform_2(%arg0: i32) -> (i32, i32) {
    %c0_i32 = arith.constant 0 : i32
    %c0_i32_0 = arith.constant 0 : i32
    return %c0_i32, %arg0 : i32, i32
  }
}

</mosaic_0001>

<llo_original>
// kernel: tpu_custom_call.1
$region0: #{tpu_custom_call.1}
  #allocation0 [shape = 'u32[]', space=smem, size = 0x4, offset = 0x4, fixed_abs, tag = 'smem constant byte address 0x4 - core index']
  #allocation1 [shape = 'u32[144,128]{1,0:T(1,128)}', space=vmem, size = 0x12000, scoped, tag = 'internal scratch']
  %s0 = inlined_call_operand.hbm [shape: f32[8,64], index: 0, kind: input, shape index: {}]
  %s1 = inlined_call_operand.hbm [shape: f32[64,128], index: 1, kind: input, shape index: {}]
  %s2 = inlined_call_operand.hbm [shape: f32[8,128], index: 2, kind: output, shape index: {}]
  %s3 = sld [smem:[#allocation0]]
  $region26: #{tpu_custom_call.1} parent=0
    _
  %s5 = ssub.s32 1, %s3
  %s6 = scalar_select 0, %s5, %s3
  $region1: #{tpu_custom_call.1} parent=0
    #allocation2 [shape = 'u8[4096]{0}', space=vmem, size = 0x1000, scoped, tag = 'input window, operand 0, single buffered']
    #allocation3 [shape = 's32[1]{0}', space=sflag, size = 0x4, scoped, tag = 'scoped memory for tpu_custom_call.1']
    #allocation4 [shape = 's32[1]{0}', space=sflag, size = 0x4, scoped, tag = 'scoped memory for tpu_custom_call.1']
    #allocation5 [shape = 'u8[32768]{0}', space=vmem, size = 0x8000, scoped, tag = 'input window, operand 1, single buffered']
    #allocation6 [shape = 's32[1]{0}', space=sflag, size = 0x4, scoped, tag = 'scoped memory for tpu_custom_call.1']
    #allocation7 [shape = 'u8[4096]{0}', space=vmem, size = 0x1000, scoped, tag = 'output window, operand 0, single buffered']
    %7 = vsyncpa [#allocation3], 0
    %8 = vsyncpa [#allocation6], 0
    %9 = vsyncpa [#allocation4], 0
    // Predicated region
    $region2: #{tpu_custom_call.1} parent=1 // pred_check
      _
    $region3: #{tpu_custom_call.1} parent=1 // pred_check_branch
      %11 = sbr.rel (0) target = $region5
    $region4: #{tpu_custom_call.1} parent=1 // pred_region
      %s13 = ssub.s32 128, 128
      %14 = vsyncadd [#allocation3], %s13
      %s16 = sshll.u32 [#allocation2], 4
      %s17 = int_to_ptr.vmem [resolvable:$true] %s16
      %19 = dma.hbm_to_vmem [thread:$0]  %s0, 128, %s17, [#allocation3]
    $region5: #{tpu_custom_call.1} parent=1 // pred_fallthru
      _
    // Predicated region
    $region6: #{tpu_custom_call.1} parent=1 // pred_check
      _
    $region7: #{tpu_custom_call.1} parent=1 // pred_check_branch
      %21 = sbr.rel (0) target = $region9
    $region8: #{tpu_custom_call.1} parent=1 // pred_region
      %s23 = ssub.s32 1024, 1024
      %24 = vsyncadd [#allocation6], %s23
      %s25 = sshll.u32 [#allocation5], 4
      %s26 = int_to_ptr.vmem [resolvable:$true] %s25
      %31 = dma.hbm_to_vmem [thread:$0]  %s1, 1024, %s26, [#allocation6], 128, 128, 8
    $region9: #{tpu_custom_call.1} parent=1 // pred_fallthru
      _
    // Predicated region
    $region10: #{tpu_custom_call.1} parent=1 // pred_check
      _
    $region11: #{tpu_custom_call.1} parent=1 // pred_check_branch
      %33 = sbr.rel (0) target = $region13
    $region12: #{tpu_custom_call.1} parent=1 // pred_region
      %34 = dma.done [#allocation3], 128
    $region13: #{tpu_custom_call.1} parent=1 // pred_fallthru
      _
    // Predicated region
    $region14: #{tpu_custom_call.1} parent=1 // pred_check
      _
    $region15: #{tpu_custom_call.1} parent=1 // pred_check_branch
      %36 = sbr.rel (0) target = $region17
    $region16: #{tpu_custom_call.1} parent=1 // pred_region
      %37 = dma.done [#allocation6], 1024
    $region17: #{tpu_custom_call.1} parent=1 // pred_fallthru
      _
    %v38 = vld [vmem:[#allocation2] sm:$0xff]
    %v39 = vld [vmem:[#allocation5] sm:$0xff]
    %v40 = vld [vmem:[#allocation5 + $0x8] sm:$0xff]
    %v41 = vld [vmem:[#allocation5 + $0x10] sm:$0xff]
    %v42 = vld [vmem:[#allocation5 + $0x18] sm:$0xff]
    %v43 = vld [vmem:[#allocation5 + $0x20] sm:$0xff]
    %v44 = vld [vmem:[#allocation5 + $0x28] sm:$0xff]
    %v45 = vld [vmem:[#allocation5 + $0x30] sm:$0xff]
    %v46 = vld [vmem:[#allocation5 + $0x38] sm:$0xff]
    %vm47 = vcmask 523264
    %v49 = vsel %vm47, %v38, 0
    %51 = vmatprep.subr.mxu0 0.0
    %52 = vmatpush1.msra.mxu0 %v39
    %53 = vmatprep.subr.mxu0 0.0
    %54 = vmatpush1.msra.mxu0 %v40
    %55 = vmatprep.subr.mxu0 0.0
    %56 = vmatpush1.msra.mxu0 %v41
    %57 = vmatprep.subr.mxu0 0.0
    %58 = vmatpush1.msra.mxu0 %v42
    %59 = vmatprep.subr.mxu0 0.0
    %60 = vmatpush1.msra.mxu0 %v43
    %61 = vmatprep.subr.mxu0 0.0
    %62 = vmatpush1.msra.mxu0 %v44
    %63 = vmatprep.subr.mxu0 0.0
    %64 = vmatpush1.msra.mxu0 %v45
    %65 = vmatprep.subr.mxu0 0.0
    %66 = vmatpush1.msra.mxu0 %v46
    %67 = vmatprep.subr.mxu0 0.0
    %68 = vmatpush1.msra.mxu0 0.0
    %69 = vmatprep.subr.mxu0 0.0
    %70 = vmatpush1.msra.mxu0 0.0
    %71 = vmatprep.subr.mxu0 0.0
    %72 = vmatpush1.msra.mxu0 0.0
    %73 = vmatprep.subr.mxu0 0.0
    %74 = vmatpush1.msra.mxu0 0.0
    %75 = vmatprep.subr.mxu0 0.0
    %76 = vmatpush1.msra.mxu0 0.0
    %77 = vmatprep.subr.mxu0 0.0
    %78 = vmatpush1.msra.mxu0 0.0
    %79 = vmatprep.subr.mxu0 0.0
    %80 = vmatpush1.msra.mxu0 0.0
    %81 = vmatprep.subr.mxu0 0.0
    %82 = vmatpush1.msra.mxu0 0.0
    %83 = vmatprep.subr.mxu0 0.0
    %84 = vmatpush1.msra.mxu0 0.0
    %85 = vmatprep.subr.mxu0 0.0
    %86 = vmatpush1.msra.mxu0 0.0
    %87 = vmatprep.subr.mxu0 0.0
    %88 = vmatpush1.msra.mxu0 0.0
    %89 = vmatprep.subr.mxu0 0.0
    %90 = vmatpush1.msra.mxu0 0.0
    %91 = vmatprep.subr.mxu0 0.0
    %92 = vmatpush1.msra.mxu0 0.0
    %93 = vmatprep.subr.mxu0 0.0
    %94 = vmatpush1.msra.mxu0 0.0
    %95 = vmatprep.subr.mxu0 0.0
    %96 = vmatpush1.msra.mxu0 0.0
    %97 = vmatprep.subr.mxu0 0.0
    %98 = vmatpush1.msra.mxu0 0.0
    %99 = vmatprep.subr.mxu0 0.0
    %100 = vmatpush1.msra.mxu0 0.0
    %101 = vmatprep.subr.mxu0 0.0
    %102 = vmatpush1.msra.mxu0 0.0
    %103 = vmatprep.subr.mxu0 0.0
    %104 = vmatpush1.msra.mxu0 0.0
    %105 = vmatprep.subr.mxu0 0.0
    %106 = vmatpush1.msra.mxu0 0.0
    %107 = vmatprep.subr.mxu0 0.0
    %108 = vmatpush1.msra.mxu0 0.0
    %109 = vmatprep.subr.mxu0 0.0
    %110 = vmatpush1.msra.mxu0 0.0
    %111 = vmatprep.subr.mxu0 0.0
    %112 = vmatpush1.msra.mxu0 0.0
    %113 = vmatprep.subr.mxu0 0.0
    %114 = vmatpush1.msra.mxu0 0.0
    %115 = vmatprep.mubr.f32.mxu0 0.0
    %116 = vmatmul.mubr.f32.gmra.mrb[0].mxu0 %v49
    %v117 = vpop.f32.mrb[0].mxu0
    %v118 = vadd.f32 0.0, %v117
    %v119 = vpop.f32.mrb[0].mxu0
    %120 = vdwg.mxu0
    %v121 = vtanh.pop %v118
    %122 = vst [vmem:[#allocation7] sm:$0xff] %v121
    // Predicated region
    $region18: #{tpu_custom_call.1} parent=1 // pred_check
      _
    $region19: #{tpu_custom_call.1} parent=1 // pred_check_branch
      %124 = sbr.rel (0) target = $region21
    $region20: #{tpu_custom_call.1} parent=1 // pred_region
      %s126 = ssub.s32 128, 128
      %127 = vsyncadd [#allocation4], %s126
      %s129 = sshll.u32 [#allocation7], 4
      %s130 = int_to_ptr.vmem [resolvable:$true] %s129
      %132 = dma.vmem_to_hbm [thread:$0]  %s130, 128, %s2, [#allocation4]
    $region21: #{tpu_custom_call.1} parent=1 // pred_fallthru
      _
    // Predicated region
    $region22: #{tpu_custom_call.1} parent=1 // pred_check
      _
    $region23: #{tpu_custom_call.1} parent=1 // pred_check_branch
      %134 = sbr.rel (0) target = $region25
    $region24: #{tpu_custom_call.1} parent=1 // pred_region
      %135 = dma.done [#allocation4], 128
    $region25: #{tpu_custom_call.1} parent=1 // pred_fallthru
      _
    %136 = vsyncpa [#allocation3], 1
    %137 = vsyncpa [#allocation6], 1
    %138 = vsyncpa [#allocation4], 1

</llo_original>
